<compile_context>
chip_gen: v6e
topology: v6e:2x2x1
jax: 0.10.0
libtpu: 0.0.40
codegen_flags: <defaults>
</compile_context>

<pallas_src>
import functools

import jax
import jax.numpy as jnp
from jax import lax
from jax.experimental import pallas as pl
from jax.experimental.pallas import tpu as pltpu

_LANES = 128
_SUBLANES = 8
_CHUNK_ROWS = 512                   # in-kernel reduce chunk: (512,128) f32 temp = 256 KiB
_SINGLE_BLOCK_MAX_ROWS = 1024       # <= 128K elements: one un-pipelined block
_TILE_BYTES_PER_INPUT = 4 * 1024 * 1024   # per-input, per-pipeline-buffer tile target
_MIN_TILED_BLOCKS = 4               # aim for >= 4 grid steps so the pipeline overlaps
_NUM_CORE_SPLITS = 2                # leading "parallel" axis (both v7x TensorCores)
_LOG2 = 0.6931471805599453


def _logcosh(yt, yp):
    # Numerically stable logcosh: |x| + log(1 + exp(-2|x|)) - log(2).
    # exp(-2|x|) <= 1 (no overflow); 1 exp + 1 log on the EUP per element.
    x = yt.astype(jnp.float32) - yp.astype(jnp.float32) + 1e-12
    ax = jnp.abs(x)
    # TODO(synk): if a v7x bundle dump shows the EUP/VPU slots binding, hoist the
    # -log(2) to the finalize (requires masking the zero-padded tail) and consider
    # a polynomial softplus for log(1+exp(-2|x|)); on v5e/v6e HBM hides this.
    return ax + jnp.log(1.0 + jnp.exp(-2.0 * ax)) - _LOG2


def _single_block_kernel(yt_ref, yp_ref, o_ref):
    # Whole (small) problem in one VMEM block: no grid, no accumulator.
    o_ref[...] = jnp.sum(_logcosh(yt_ref[...], yp_ref[...])).reshape(1, 1)


def _tiled_kernel(yt_ref, yp_ref, o_ref, *, block_rows, chunk_rows, valid_rows,
                  num_blocks, blocks_per_split, needs_block_guard, needs_row_mask):
    c = pl.program_id(0)          # core-split ("parallel") axis
    i = pl.program_id(1)          # sequential reduction axis
    linear = c * blocks_per_split + i

    # Output block (1, 8, 128) is resident across the inner axis -> use it as
    # the per-core accumulator directly (zero once per core split).
    @pl.when(i == 0)
    def _():
        o_ref[...] = jnp.zeros_like(o_ref)

    def accumulate():
        n_chunks = block_rows // chunk_rows
        if needs_row_mask:
            # Hoisted once per grid step (broadcasts are not CSE'd in loops).
            row_iota = lax.broadcasted_iota(jnp.int32, (chunk_rows, _LANES), 0)
            row0 = linear * block_rows

        def body(k, acc):
            start = pl.multiple_of(k * chunk_rows, chunk_rows)
            val = _logcosh(yt_ref[pl.ds(start, chunk_rows), :],
                           yp_ref[pl.ds(start, chunk_rows), :])
            if needs_row_mask:
                # Mask rows past the real array extent (ragged last block reads
                # stale VMEM); applied in every block for simplicity — a couple
                # of VPU ops/elem, hidden under the HBM stream.
                gidx = row_iota + (row0 + k * chunk_rows)
                val = jnp.where(gidx < valid_rows, val, 0.0)
            # VPU-only partial reduce: collapse (chunk,128) -> (8,128) by adding
            # (8,128) vreg groups; no XLU sublane reduce inside the hot loop.
            return acc + jnp.sum(
                val.reshape(chunk_rows // _SUBLANES, _SUBLANES, _LANES), axis=0)

        acc8 = lax.fori_loop(0, n_chunks, body,
                             jnp.zeros((_SUBLANES, _LANES), jnp.float32))
        o_ref[...] += acc8.reshape(1, _SUBLANES, _LANES)

    if needs_block_guard:
        # Last (clamped, duplicated) block of an odd split contributes nothing.
        pl.when(linear < num_blocks)(accumulate)
    else:
        accumulate()


def _round_up(a, m):
    return ((a + m - 1) // m) * m


def log_cosh_loss(y_t, y_prime_t):
    assert y_t.shape == y_prime_t.shape
    n_elems = int(y_t.size)
    assert n_elems > 0
    inv_n = 1.0 / float(n_elems)

    # Keep native dtype; the kernel upcasts per chunk (halves HBM traffic for bf16).
    flat_t = jnp.ravel(y_t)
    flat_p = jnp.ravel(y_prime_t)

    rows_needed = pl.cdiv(n_elems, _LANES)
    padded_rows = _round_up(rows_needed, _SUBLANES)
    padded = padded_rows * _LANES
    if padded != n_elems:
        # Tiny pad only (< 8*128 elements). Padded zeros contribute
        # ~logcosh(1e-12) ~= 0 to the sum; the mean divides by the true count.
        flat_t = jnp.pad(flat_t, (0, padded - n_elems))
        flat_p = jnp.pad(flat_p, (0, padded - n_elems))

    yt2 = flat_t.reshape(padded_rows, _LANES)
    yp2 = flat_p.reshape(padded_rows, _LANES)

    if padded_rows <= _SINGLE_BLOCK_MAX_ROWS:
        # Genuinely small input: one block, no pipeline needed.
        total = pl.pallas_call(
            _single_block_kernel,
            out_shape=jax.ShapeDtypeStruct((1, 1), jnp.float32),
            in_specs=[
                pl.BlockSpec((padded_rows, _LANES), lambda: (0, 0)),
                pl.BlockSpec((padded_rows, _LANES), lambda: (0, 0)),
            ],
            out_specs=pl.BlockSpec((1, 1), lambda: (0, 0)),
        )(yt2, yp2)[0, 0]
        return total * inv_n

    # --- pipelined, two-core-split reduction path ---
    itemsize = jnp.dtype(y_t.dtype).itemsize
    max_block_rows = max(
        _CHUNK_ROWS,
        (_TILE_BYTES_PER_INPUT // (_LANES * itemsize)) // _CHUNK_ROWS * _CHUNK_ROWS)
    block_rows = min(max_block_rows,
                     _round_up(pl.cdiv(rows_needed, _MIN_TILED_BLOCKS), _CHUNK_ROWS))
    num_blocks = pl.cdiv(padded_rows, block_rows)
    # TODO(synk): query the actual TensorCore count; 2 covers v7x and is a no-op
    # (pure grid restructuring) on single-core v5e/v6e.
    num_splits = _NUM_CORE_SPLITS if num_blocks >= _NUM_CORE_SPLITS else 1
    blocks_per_split = pl.cdiv(num_blocks, num_splits)
    needs_block_guard = num_splits * blocks_per_split != num_blocks
    needs_row_mask = num_blocks * block_rows != padded_rows

    def in_index_map(c, i):
        linear = c * blocks_per_split + i
        if needs_block_guard:
            # Clamp so the DMA never targets a fully out-of-range block; the
            # kernel skips the duplicated block's contribution.
            linear = jnp.minimum(linear, num_blocks - 1)
        return (linear, 0)

    kernel = functools.partial(
        _tiled_kernel,
        block_rows=block_rows, chunk_rows=_CHUNK_ROWS, valid_rows=padded_rows,
        num_blocks=num_blocks, blocks_per_split=blocks_per_split,
        needs_block_guard=needs_block_guard, needs_row_mask=needs_row_mask)

    partials = pl.pallas_call(
        kernel,
        out_shape=jax.ShapeDtypeStruct((num_splits, _SUBLANES, _LANES), jnp.float32),
        grid_spec=pltpu.PrefetchScalarGridSpec(
            num_scalar_prefetch=0,
            grid=(num_splits, blocks_per_split),
            in_specs=[
                pl.BlockSpec((block_rows, _LANES), in_index_map),
                pl.BlockSpec((block_rows, _LANES), in_index_map),
            ],
            out_specs=pl.BlockSpec((1, _SUBLANES, _LANES), lambda c, i: (c, 0, 0)),
        ),
        compiler_params=pltpu.CompilerParams(
            dimension_semantics=("parallel", "arbitrary"),
            # 2 inputs x 2 pipeline buffers x 4 MiB tile = 16 MiB + small temps;
            # 32 MiB fits under v7x's 64 MiB physical VMEM with headroom.
            vmem_limit_bytes=32 * 1024 * 1024,
        ),
    )(yt2, yp2)

    # Final (tiny) lane/sublane/core collapse + mean scale in the wrapper.
    return jnp.sum(partials) * inv_n


if __name__ == "__main__":
    key = jax.random.PRNGKey(0)
    k1, k2, k3, k4 = jax.random.split(key, 4)

    def ref_loss(a, b):
        x = a - b + 1e-12
        return jnp.mean(jnp.log((jnp.exp(x) + jnp.exp(-x)) / 2.0))

    # Small NCHW input, like the PyTorch module's expected inputs.
    shape = (2, 4, 16, 16)
    y_t = jax.random.normal(k1, shape, dtype=jnp.float32)
    y_prime_t = jax.random.normal(k2, shape, dtype=jnp.float32)

    loss = log_cosh_loss(y_t, y_prime_t)
    jax.block_until_ready(loss)
    ref = ref_loss(y_t, y_prime_t)
    assert jnp.allclose(loss, ref, rtol=1e-5, atol=1e-6), (loss, ref)

    # Larger, deliberately ragged input: exercises the pipelined path, the
    # 2-way core split with an odd block count, and the tail-row mask.
    big_shape = (300_001,)
    y_t_big = jax.random.normal(k3, big_shape, dtype=jnp.float32)
    y_p_big = jax.random.normal(k4, big_shape, dtype=jnp.float32)
    loss_big = log_cosh_loss(y_t_big, y_p_big)
    jax.block_until_ready(loss_big)
    ref_big = ref_loss(y_t_big, y_p_big)
    assert jnp.allclose(loss_big, ref_big, rtol=1e-4, atol=1e-6), (loss_big, ref_big)

    print("KERNEL_OK")
</pallas_src>

<mosaic_0001>
module attributes {stable_mosaic.version = 11 : i64} {
  func.func @_single_block_kernel(%arg0: memref<16x128xf32, #tpu.memory_space<vmem>>, %arg1: memref<16x128xf32, #tpu.memory_space<vmem>>, %arg2: memref<1x1xf32, #tpu.memory_space<vmem>>) attributes {dimension_semantics = [], scalar_prefetch = 0 : i64, scratch_operands = 0 : i64, tpu.core_type = #tpu.core_type<tc>} {
    %c0 = arith.constant 0 : index
    %c0_0 = arith.constant 0 : index
    %0 = vector.load %arg0[%c0, %c0_0] : memref<16x128xf32, #tpu.memory_space<vmem>>, vector<16x128xf32>
    %c0_1 = arith.constant 0 : index
    %c0_2 = arith.constant 0 : index
    %1 = vector.load %arg1[%c0_1, %c0_2] : memref<16x128xf32, #tpu.memory_space<vmem>>, vector<16x128xf32>
    %2 = arith.subf %0, %1 : vector<16x128xf32>
    %cst = arith.constant 9.99999996E-13 : f32
    %3 = vector.broadcast %cst : f32 to vector<16x128xf32>
    %4 = arith.addf %2, %3 : vector<16x128xf32>
    %5 = math.absf %4 : vector<16x128xf32>
    %cst_3 = arith.constant -2.000000e+00 : f32
    %6 = vector.broadcast %cst_3 : f32 to vector<16x128xf32>
    %7 = arith.mulf %6, %5 : vector<16x128xf32>
    %8 = math.exp %7 : vector<16x128xf32>
    %cst_4 = arith.constant 1.000000e+00 : f32
    %9 = vector.broadcast %cst_4 : f32 to vector<16x128xf32>
    %10 = arith.addf %9, %8 : vector<16x128xf32>
    %11 = math.log %10 : vector<16x128xf32>
    %12 = arith.addf %5, %11 : vector<16x128xf32>
    %cst_5 = arith.constant 0.693147182 : f32
    %13 = vector.broadcast %cst_5 : f32 to vector<16x128xf32>
    %14 = arith.subf %12, %13 : vector<16x128xf32>
    %15 = vector.shape_cast %14 : vector<16x128xf32> to vector<1x16x128xf32>
    %cst_6 = arith.constant dense<0.000000e+00> : vector<1xf32>
    %16 = vector.multi_reduction <add>, %15, %cst_6 [1, 2] : vector<1x16x128xf32> to vector<1xf32>
    %17 = vector.shape_cast %16 : vector<1xf32> to vector<1x1x1xf32>
    %18 = vector.extract %17[0, 0, 0] : f32 from vector<1x1x1xf32>
    %19 = vector.broadcast %18 : f32 to vector<1x1xf32>
    %c0_7 = arith.constant 0 : index
    %c0_8 = arith.constant 0 : index
    %20 = vector.load %arg2[%c0_7, %c0_8] : memref<1x1xf32, #tpu.memory_space<vmem>>, vector<1x1xf32>
    tpu.vector_store %arg2[%c0_7, %c0_8], %19 {strides = array<i32>} : memref<1x1xf32, #tpu.memory_space<vmem>>, vector<1x1xf32>,
    return
  }
}

</mosaic_0001>

<llo_original>
// kernel: tpu_custom_call.1
$region0: #{tpu_custom_call.1}
  #allocation0 [shape = 'u32[]', space=smem, size = 0x4, offset = 0x4, fixed_abs, tag = 'smem constant byte address 0x4 - core index']
  #allocation1 [shape = 'u32[144,128]{1,0:T(1,128)}', space=vmem, size = 0x12000, scoped, tag = 'internal scratch']
  %s0 = inlined_call_operand.hbm [shape: f32[16,128], index: 0, kind: input, shape index: {}]
  %s1 = inlined_call_operand.hbm [shape: f32[16,128], index: 1, kind: input, shape index: {}]
  %s2 = inlined_call_operand.hbm [shape: f32[1,1], index: 2, kind: output, shape index: {}]
  %s3 = sld [smem:[#allocation0]]
  $region26: #{tpu_custom_call.1} parent=0
    _
  %s5 = ssub.s32 1, %s3
  %s6 = scalar_select 0, %s5, %s3
  $region1: #{tpu_custom_call.1} parent=0
    #allocation2 [shape = 'u8[8192]{0}', space=vmem, size = 0x2000, scoped, tag = 'input window, operand 0, single buffered']
    #allocation3 [shape = 's32[1]{0}', space=sflag, size = 0x4, scoped, tag = 'scoped memory for tpu_custom_call.1']
    #allocation4 [shape = 's32[1]{0}', space=sflag, size = 0x4, scoped, tag = 'scoped memory for tpu_custom_call.1']
    #allocation5 [shape = 'u8[8192]{0}', space=vmem, size = 0x2000, scoped, tag = 'input window, operand 1, single buffered']
    #allocation6 [shape = 's32[1]{0}', space=sflag, size = 0x4, scoped, tag = 'scoped memory for tpu_custom_call.1']
    #allocation7 [shape = 'u8[512]{0}', space=vmem, size = 0x400, scoped, tag = 'output window, operand 0, single buffered']
    %7 = vsyncpa [#allocation3], 0
    %8 = vsyncpa [#allocation6], 0
    %9 = vsyncpa [#allocation4], 0
    // Predicated region
    $region2: #{tpu_custom_call.1} parent=1 // pred_check
      _
    $region3: #{tpu_custom_call.1} parent=1 // pred_check_branch
      %11 = sbr.rel (0) target = $region5
    $region4: #{tpu_custom_call.1} parent=1 // pred_region
      %s13 = ssub.s32 256, 256
      %14 = vsyncadd [#allocation3], %s13
      %s15 = sshll.u32 [#allocation2], 4
      %s16 = int_to_ptr.vmem [resolvable:$true] %s15
      %21 = dma.hbm_to_vmem [thread:$0]  %s0, 256, %s16, [#allocation3], 128, 128, 8
    $region5: #{tpu_custom_call.1} parent=1 // pred_fallthru
      _
    // Predicated region
    $region6: #{tpu_custom_call.1} parent=1 // pred_check
      _
    $region7: #{tpu_custom_call.1} parent=1 // pred_check_branch
      %23 = sbr.rel (0) target = $region9
    $region8: #{tpu_custom_call.1} parent=1 // pred_region
      %s25 = ssub.s32 256, 256
      %26 = vsyncadd [#allocation6], %s25
      %s27 = sshll.u32 [#allocation5], 4
      %s28 = int_to_ptr.vmem [resolvable:$true] %s27
      %33 = dma.hbm_to_vmem [thread:$0]  %s1, 256, %s28, [#allocation6], 128, 128, 8
    $region9: #{tpu_custom_call.1} parent=1 // pred_fallthru
      _
    // Predicated region
    $region10: #{tpu_custom_call.1} parent=1 // pred_check
      _
    $region11: #{tpu_custom_call.1} parent=1 // pred_check_branch
      %35 = sbr.rel (0) target = $region13
    $region12: #{tpu_custom_call.1} parent=1 // pred_region
      %36 = dma.done [#allocation3], 256
    $region13: #{tpu_custom_call.1} parent=1 // pred_fallthru
      _
    // Predicated region
    $region14: #{tpu_custom_call.1} parent=1 // pred_check
      _
    $region15: #{tpu_custom_call.1} parent=1 // pred_check_branch
      %38 = sbr.rel (0) target = $region17
    $region16: #{tpu_custom_call.1} parent=1 // pred_region
      %39 = dma.done [#allocation6], 256
    $region17: #{tpu_custom_call.1} parent=1 // pred_fallthru
      _
    %v40 = vld [vmem:[#allocation2] sm:$0xff]
    %v41 = vld [vmem:[#allocation2 + $0x8] sm:$0xff]
    %v42 = vld [vmem:[#allocation5] sm:$0xff]
    %v43 = vld [vmem:[#allocation5 + $0x8] sm:$0xff]
    %v44 = vsub.f32 %v40, %v42
    %v45 = vsub.f32 %v41, %v43
    %v46 = vadd.f32 %v44, 1e-12
    %v47 = vadd.f32 %v45, 1e-12
    %v48 = vand.u32 2147483647, %v46
    %v49 = vand.u32 2147483647, %v47
    %v50 = vmul.f32 %v48, -2.0
    %v51 = vmul.f32 %v49, -2.0
    %v52 = vmul.f32 %v50, 1.442695
    %v53 = vpow.pop %v52
    %v54 = vmul.f32 %v51, 1.442695
    %v55 = vpow.pop %v54
    %v56 = vadd.f32 %v53, 1.0
    %v57 = vadd.f32 %v55, 1.0
    %v58 = vlog2.pop %v56
    %v59 = vmul.f32 %v58, 0.6931472
    %v60 = vlog2.pop %v57
    %v61 = vmul.f32 %v60, 0.6931472
    %v62 = vadd.f32 %v48, %v59
    %v63 = vadd.f32 %v49, %v61
    %v64 = vsub.f32 %v62, 0.6931472
    %v65 = vsub.f32 %v63, 0.6931472
    %v66 = vadd.f32 %v64, %v65
    %67 = vadd.xlane.f32.xlu0 %v66
    %v68 = vpop.xlane.xlu0 %67
    %v69 = vrot.slane %v68, 4
    %v70 = vadd.f32 %v68, %v69
    %v71 = vrot.slane %v70, 2
    %v72 = vadd.f32 %v70, %v71
    %v73 = vrot.slane %v72, 1
    %v74 = vadd.f32 %v72, %v73
    %s75 = vtos %v74
    %v76 = vstv %s75
    %vm77 = vcmask 0
    %78 = vst.msk [vmem:[#allocation7] sm:$0x1] %vm77, %v76
    // Predicated region
    $region18: #{tpu_custom_call.1} parent=1 // pred_check
      _
    $region19: #{tpu_custom_call.1} parent=1 // pred_check_branch
      %80 = sbr.rel (0) target = $region21
    $region20: #{tpu_custom_call.1} parent=1 // pred_region
      %s82 = ssub.s32 16, 16
      %83 = vsyncadd [#allocation4], %s82
      %s85 = sshll.u32 [#allocation7], 4
      %s86 = int_to_ptr.vmem [resolvable:$true] %s85
      %88 = dma.vmem_to_hbm [thread:$0]  %s86, 16, %s2, [#allocation4]
    $region21: #{tpu_custom_call.1} parent=1 // pred_fallthru
      _
    // Predicated region
    $region22: #{tpu_custom_call.1} parent=1 // pred_check
      _
    $region23: #{tpu_custom_call.1} parent=1 // pred_check_branch
      %90 = sbr.rel (0) target = $region25
    $region24: #{tpu_custom_call.1} parent=1 // pred_region
      %91 = dma.done [#allocation4], 16
    $region25: #{tpu_custom_call.1} parent=1 // pred_fallthru
      _
    %92 = vsyncpa [#allocation3], 1
    %93 = vsyncpa [#allocation6], 1
    %94 = vsyncpa [#allocation4], 1

</llo_original>
